<compile_context>
chip_gen: v5e
topology: v5e:2x2
jax: 0.10.0
libtpu: 0.0.40
codegen_flags: <defaults>
</compile_context>

<pallas_src>
import jax
import jax.numpy as jnp
from jax import lax
from jax.experimental import pallas as pl
from jax.experimental.pallas import tpu as pltpu


def _double_conv_kernel(x_ref, bd1_ref, b1_ref, t_ref, b2_ref, o_ref, pad_ref):
    # x_ref:   (IB, H, W*Cin)      lane-dense input rows
    # bd1_ref: (W*Cin, W*Cmid)     block-diagonal folded 1x1 conv weight
    # b1_ref:  (1, W*Cmid)         folded bias (tiled per w)
    # t_ref:   (3, W*Cmid, W*Cout) block-Toeplitz folded 3x3 conv weights (per dy)
    # b2_ref:  (1, W*Cout)         folded bias (tiled per w)
    # o_ref:   (IB, H, W*Cout)     lane-dense output rows
    # pad_ref: (IB, H+2, W*Cmid)   row-padded intermediate scratch
    IB, H, WCin = x_ref.shape
    WCm = pad_ref.shape[2]
    WCo = o_ref.shape[2]

    # ---- BN0 + 1x1 conv + BN1 + ReLU (+ Dropout eval = identity) ------------
    x = x_ref[...].reshape(IB * H, WCin).astype(bd1_ref.dtype)
    h1 = jnp.maximum(
        jnp.dot(x, bd1_ref[...], preferred_element_type=jnp.float32)
        + b1_ref[...],
        0.0)                                                   # (IB*H, W*Cmid)
    h1c = h1.astype(pad_ref.dtype)

    # ---- row-padded scratch for the dy=0 / dy=2 taps: interior fully --------
    # ---- overwritten; only the 2 halo rows are zeroed (parallel-grid safe) --
    pad_ref[:, 1:H + 1, :] = h1c.reshape(IB, H, WCm)
    zero_row = jnp.zeros((IB, 1, WCm), pad_ref.dtype)
    pad_ref[:, 0:1, :] = zero_row
    pad_ref[:, H + 1:H + 2, :] = zero_row

    # ---- 3x3 conv (pad=1) + BN2 + ReLU: 3 block-Toeplitz matmuls ------------
    # Center tap straight from the live value (no scratch reload).
    acc = (jnp.dot(h1c, t_ref[1], preferred_element_type=jnp.float32)
           + b2_ref[...])                                       # (IB*H, W*Cout)
    for dy in (0, 2):
        slab = pad_ref[:, dy:dy + H, :].reshape(IB * H, WCm)
        acc = acc + jnp.dot(slab, t_ref[dy],
                            preferred_element_type=jnp.float32)
    o_ref[...] = jnp.maximum(acc, 0.0).reshape(IB, H, WCo).astype(o_ref.dtype)


def _fold_and_pack_params(w1, w2, s0, b0, s1, b1, s2, b2, W):
    """Fold the BN affines into the convs and build lane-dense weight matrices."""
    s0, b0, s1, b1, s2, b2 = (a.reshape(-1).astype(jnp.float32)
                              for a in (s0, b0, s1, b1, s2, b2))
    w1 = w1.astype(jnp.float32)
    w2 = w2.astype(jnp.float32)
    Cin, Cmid = w1.shape
    Cout = w2.shape[3]

    # BN0 -> 1x1 conv -> BN1 folded into one affine matmul.
    w1f = (s0[:, None] * w1) * s1[None, :]                      # (Cin, Cmid)
    b1f = (b0 @ w1) * s1 + b1                                   # (Cmid,)
    # BN2 folded into the 3x3 conv output channels.
    w2f = w2 * s2                                               # (3,3,Cmid,Cout)

    # Block-diagonal 1x1 weight: (W*Cin) row -> (W*Cmid) row.
    eye_w = jnp.eye(W, dtype=jnp.float32)
    bd1 = jnp.einsum('wv,ij->wivj', eye_w, w1f).reshape(W * Cin, W * Cmid)
    b1_row = jnp.tile(b1f, W).reshape(1, W * Cmid)

    # Block-Toeplitz 3x3 weights per vertical tap dy: (W*Cmid) row -> (W*Cout)
    # row, with the dx taps and the width-1 zero padding baked in.
    u = jnp.arange(W)[None, None, :]
    wp = jnp.arange(W)[None, :, None]
    dx = jnp.arange(3)[:, None, None]
    P = (u == wp + dx - 1).astype(jnp.float32)                  # (3, W, W)
    T = jnp.einsum('xwu,yxio->yuiwo', P, w2f).reshape(3, W * Cmid, W * Cout)
    b2_row = jnp.tile(b2, W).reshape(1, W * Cout)
    return bd1, b1_row, T, b2_row


def _auto_images_per_block(n, h):
    """Largest divisor of n with ib*h <= ~128 rows (fills the MXU M dim)."""
    ib = max(1, min(n, max(1, 128 // max(h, 1))))
    while n % ib:
        ib -= 1
    return max(ib, 1)


def double_conv_new(x_nchw, w1, w2, s0, b0, s1, b1, s2, b2, *,
                    images_per_block=None, compute_dtype=jnp.float32):
    """Forward pass. x_nchw: (N, Cin, H, W); returns (N, Cout, H, W).

    compute_dtype=jnp.bfloat16 halves MXU cycles on v6e/v7x (keep f32 for exact
    parity with the f32 reference).  images_per_block=None auto-picks a block
    so IB*H ~ 128 rows; pass an explicit divisor of N to override.
    """
    N, Cin, H, W = x_nchw.shape
    Cmid = w1.shape[1]
    Cout = w2.shape[3]
    IB = (_auto_images_per_block(N, H) if images_per_block is None
          else images_per_block)
    assert N % IB == 0, "images_per_block must divide the batch size"

    bd1, b1_row, T, b2_row = _fold_and_pack_params(
        w1, w2, s0, b0, s1, b1, s2, b2, W)
    bd1 = bd1.astype(compute_dtype)
    T = T.astype(compute_dtype)

    # NCHW -> lane-dense (N, H, W*Cin) rows.
    x_rows = jnp.transpose(x_nchw, (0, 2, 3, 1)).reshape(N, H, W * Cin)

    out_rows = pl.pallas_call(
        _double_conv_kernel,
        out_shape=jax.ShapeDtypeStruct((N, H, W * Cout), jnp.float32),
        grid_spec=pltpu.PrefetchScalarGridSpec(
            num_scalar_prefetch=0,
            grid=(N // IB,),
            in_specs=[
                pl.BlockSpec((IB, H, W * Cin), lambda n: (n, 0, 0)),
                pl.BlockSpec((W * Cin, W * Cmid), lambda n: (0, 0)),
                pl.BlockSpec((1, W * Cmid), lambda n: (0, 0)),
                pl.BlockSpec((3, W * Cmid, W * Cout), lambda n: (0, 0, 0)),
                pl.BlockSpec((1, W * Cout), lambda n: (0, 0)),
            ],
            out_specs=pl.BlockSpec((IB, H, W * Cout), lambda n: (n, 0, 0)),
            scratch_shapes=[pltpu.VMEM((IB, H + 2, W * Cmid), compute_dtype)],
        ),
        compiler_params=pltpu.CompilerParams(
            dimension_semantics=("parallel",)),
    )(x_rows, bd1, b1_row, T, b2_row)

    out_nhwc = out_rows.reshape(N, H, W, Cout)
    return jnp.transpose(out_nhwc, (0, 3, 1, 2))                # NHWC -> NCHW


def _bn_affine(gamma, beta, mean, var, eps=1e-5):
    scale = gamma / jnp.sqrt(var + eps)
    shift = beta - mean * scale
    return scale.reshape(1, -1), shift.reshape(1, -1)


def _reference(x_nchw, w1, w2, s0, b0, s1, b1, s2, b2):
    """Pure-JAX reference (NHWC convs via lax.conv_general_dilated)."""
    x = jnp.transpose(x_nchw, (0, 2, 3, 1)).astype(jnp.float32)
    x = x * s0 + b0
    dn = ('NHWC', 'HWIO', 'NHWC')
    Cin, Cmid = w1.shape
    h = lax.conv_general_dilated(x, w1.reshape(1, 1, Cin, Cmid), (1, 1),
                                 [(0, 0), (0, 0)], dimension_numbers=dn)
    h = jnp.maximum(h * s1 + b1, 0.0)
    h = lax.conv_general_dilated(h, w2, (1, 1),
                                 [(1, 1), (1, 1)], dimension_numbers=dn)
    h = jnp.maximum(h * s2 + b2, 0.0)
    return jnp.transpose(h, (0, 3, 1, 2))


if __name__ == "__main__":
    # Module config: in_channels=4, out_channels=8 (mid=out), k1=1/p1=0,
    # k2=3/p2=1, first_norm=True, dropout=0.1 (identity in eval).
    N, Cin, H, W = 2, 4, 16, 16
    Cmid, Cout = 8, 8

    key = jax.random.PRNGKey(0)
    keys = jax.random.split(key, 16)

    x = jax.random.normal(keys[0], (N, Cin, H, W), jnp.float32)

    # Conv weights ((Cin,Cmid) for 1x1, HWIO (3,3,Cmid,Cout) for 3x3).
    w1 = 0.2 * jax.random.normal(keys[1], (Cin, Cmid), jnp.float32)
    w2 = 0.1 * jax.random.normal(keys[2], (3, 3, Cmid, Cout), jnp.float32)

    # BatchNorm params + running stats (deterministic), folded into affine.
    def bn_params(kg, kb, km, kv, c):
        gamma = 1.0 + 0.1 * jax.random.normal(kg, (c,), jnp.float32)
        beta = 0.1 * jax.random.normal(kb, (c,), jnp.float32)
        mean = 0.1 * jax.random.normal(km, (c,), jnp.float32)
        var = 0.5 + jnp.abs(jax.random.normal(kv, (c,), jnp.float32))
        return _bn_affine(gamma, beta, mean, var)

    s0, b0 = bn_params(keys[3], keys[4], keys[5], keys[6], Cin)
    s1, b1 = bn_params(keys[7], keys[8], keys[9], keys[10], Cmid)
    s2, b2 = bn_params(keys[11], keys[12], keys[13], keys[14], Cout)

    ref = jax.block_until_ready(_reference(x, w1, w2, s0, b0, s1, b1, s2, b2))

    # Auto images_per_block (IB=2 here -> one well-filled grid step).
    out = jax.block_until_ready(
        double_conv_new(x, w1, w2, s0, b0, s1, b1, s2, b2))
    assert out.shape == (N, Cout, H, W)
    assert jnp.max(jnp.abs(out - ref)) < 1e-4

    # Also exercise the one-image-per-step ("parallel" batch grid) path.
    out1 = jax.block_until_ready(
        double_conv_new(x, w1, w2, s0, b0, s1, b1, s2, b2, images_per_block=1))
    assert jnp.max(jnp.abs(out1 - ref)) < 1e-4

    print("KERNEL_OK")
</pallas_src>

<mosaic_0001>
module attributes {stable_mosaic.version = 11 : i64} {
  func.func @_double_conv_kernel(%arg0: i32, %arg1: memref<2x16x64xf32, #tpu.memory_space<vmem>>, %arg2: memref<64x128xf32, #tpu.memory_space<vmem>>, %arg3: memref<1x128xf32, #tpu.memory_space<vmem>>, %arg4: memref<3x128x128xf32, #tpu.memory_space<vmem>>, %arg5: memref<1x128xf32, #tpu.memory_space<vmem>>, %arg6: memref<2x16x128xf32, #tpu.memory_space<vmem>>, %arg7: memref<2x18x128xf32, #tpu.memory_space<vmem>>) attributes {dimension_semantics = [#tpu.dimension_semantics<parallel>], iteration_bounds = array<i64: 1>, scalar_prefetch = 0 : i64, scratch_operands = 1 : i64, tpu.core_type = #tpu.core_type<tc>, window_params = [{transform_indices = @transform_0, window_bounds = array<i64: 2, 16, 64>}, {pipeline_mode = #tpu.pipeline_mode<synchronous>, transform_indices = @transform_1, window_bounds = array<i64: 64, 128>}, {pipeline_mode = #tpu.pipeline_mode<synchronous>, transform_indices = @transform_2, window_bounds = array<i64: 1, 128>}, {pipeline_mode = #tpu.pipeline_mode<synchronous>, transform_indices = @transform_3, window_bounds = array<i64: 3, 128, 128>}, {pipeline_mode = #tpu.pipeline_mode<synchronous>, transform_indices = @transform_4, window_bounds = array<i64: 1, 128>}, {transform_indices = @transform_5, window_bounds = array<i64: 2, 16, 128>}]} {
    %c0 = arith.constant 0 : index
    %c0_0 = arith.constant 0 : index
    %c0_1 = arith.constant 0 : index
    %0 = vector.load %arg1[%c0, %c0_0, %c0_1] : memref<2x16x64xf32, #tpu.memory_space<vmem>>, vector<2x16x64xf32>
    %1 = vector.shape_cast %0 : vector<2x16x64xf32> to vector<32x64xf32>
    %c0_2 = arith.constant 0 : index
    %c0_3 = arith.constant 0 : index
    %2 = vector.load %arg2[%c0_2, %c0_3] : memref<64x128xf32, #tpu.memory_space<vmem>>, vector<64x128xf32>
    %cst = arith.constant dense<0.000000e+00> : vector<32x128xf32>
    %3 = tpu.matmul %1, %2, %cst {dimension_numbers = #tpu.dot_dimension_numbers<[1], [0], [0], [1], [0, 0, 1, 1], [], []>} : vector<32x64xf32>, vector<64x128xf32>, vector<32x128xf32> -> vector<32x128xf32>
    %c0_4 = arith.constant 0 : index
    %c0_5 = arith.constant 0 : index
    %4 = vector.load %arg3[%c0_4, %c0_5] : memref<1x128xf32, #tpu.memory_space<vmem>>, vector<1x128xf32>
    %5 = vector.broadcast %4 : vector<1x128xf32> to vector<32x128xf32>
    %6 = arith.addf %3, %5 : vector<32x128xf32>
    %cst_6 = arith.constant 0.000000e+00 : f32
    %7 = vector.broadcast %cst_6 : f32 to vector<32x128xf32>
    %8 = arith.maximumf %6, %7 : vector<32x128xf32>
    %9 = vector.shape_cast %8 : vector<32x128xf32> to vector<2x16x128xf32>
    %c0_7 = arith.constant 0 : index
    %c1 = arith.constant 1 : index
    %c0_8 = arith.constant 0 : index
    %10 = vector.load %arg7[%c0_7, %c1, %c0_8] : memref<2x18x128xf32, #tpu.memory_space<vmem>>, vector<2x16x128xf32>
    tpu.vector_store %arg7[%c0_7, %c1, %c0_8], %9 {strides = array<i32>} : memref<2x18x128xf32, #tpu.memory_space<vmem>>, vector<2x16x128xf32>,
    %cst_9 = arith.constant 0.000000e+00 : f32
    %11 = vector.broadcast %cst_9 : f32 to vector<2x1x128xf32>
    %c0_10 = arith.constant 0 : index
    %c0_11 = arith.constant 0 : index
    %c0_12 = arith.constant 0 : index
    %12 = vector.load %arg7[%c0_10, %c0_11, %c0_12] : memref<2x18x128xf32, #tpu.memory_space<vmem>>, vector<2x1x128xf32>
    tpu.vector_store %arg7[%c0_10, %c0_11, %c0_12], %11 {strides = array<i32>} : memref<2x18x128xf32, #tpu.memory_space<vmem>>, vector<2x1x128xf32>,
    %c0_13 = arith.constant 0 : index
    %c17 = arith.constant 17 : index
    %c0_14 = arith.constant 0 : index
    %13 = vector.load %arg7[%c0_13, %c17, %c0_14] : memref<2x18x128xf32, #tpu.memory_space<vmem>>, vector<2x1x128xf32>
    tpu.vector_store %arg7[%c0_13, %c17, %c0_14], %11 {strides = array<i32>} : memref<2x18x128xf32, #tpu.memory_space<vmem>>, vector<2x1x128xf32>,
    %c1_15 = arith.constant 1 : index
    %c0_16 = arith.constant 0 : index
    %c0_17 = arith.constant 0 : index
    %14 = vector.load %arg4[%c1_15, %c0_16, %c0_17] : memref<3x128x128xf32, #tpu.memory_space<vmem>>, vector<1x128x128xf32>
    %15 = vector.shape_cast %14 : vector<1x128x128xf32> to vector<128x128xf32>
    %cst_18 = arith.constant dense<0.000000e+00> : vector<32x128xf32>
    %16 = tpu.matmul %8, %15, %cst_18 {dimension_numbers = #tpu.dot_dimension_numbers<[1], [0], [0], [1], [0, 0, 1, 1], [], []>} : vector<32x128xf32>, vector<128x128xf32>, vector<32x128xf32> -> vector<32x128xf32>
    %c0_19 = arith.constant 0 : index
    %c0_20 = arith.constant 0 : index
    %17 = vector.load %arg5[%c0_19, %c0_20] : memref<1x128xf32, #tpu.memory_space<vmem>>, vector<1x128xf32>
    %18 = vector.broadcast %17 : vector<1x128xf32> to vector<32x128xf32>
    %19 = arith.addf %16, %18 : vector<32x128xf32>
    %c0_21 = arith.constant 0 : index
    %c0_22 = arith.constant 0 : index
    %c0_23 = arith.constant 0 : index
    %20 = vector.load %arg7[%c0_21, %c0_22, %c0_23] : memref<2x18x128xf32, #tpu.memory_space<vmem>>, vector<2x16x128xf32>
    %21 = vector.shape_cast %20 : vector<2x16x128xf32> to vector<32x128xf32>
    %c0_24 = arith.constant 0 : index
    %c0_25 = arith.constant 0 : index
    %c0_26 = arith.constant 0 : index
    %22 = vector.load %arg4[%c0_24, %c0_25, %c0_26] : memref<3x128x128xf32, #tpu.memory_space<vmem>>, vector<1x128x128xf32>
    %23 = vector.shape_cast %22 : vector<1x128x128xf32> to vector<128x128xf32>
    %cst_27 = arith.constant dense<0.000000e+00> : vector<32x128xf32>
    %24 = tpu.matmul %21, %23, %cst_27 {dimension_numbers = #tpu.dot_dimension_numbers<[1], [0], [0], [1], [0, 0, 1, 1], [], []>} : vector<32x128xf32>, vector<128x128xf32>, vector<32x128xf32> -> vector<32x128xf32>
    %25 = arith.addf %19, %24 : vector<32x128xf32>
    %c0_28 = arith.constant 0 : index
    %c2 = arith.constant 2 : index
    %c0_29 = arith.constant 0 : index
    %26 = vector.load %arg7[%c0_28, %c2, %c0_29] : memref<2x18x128xf32, #tpu.memory_space<vmem>>, vector<2x16x128xf32>
    %27 = vector.shape_cast %26 : vector<2x16x128xf32> to vector<32x128xf32>
    %c2_30 = arith.constant 2 : index
    %c0_31 = arith.constant 0 : index
    %c0_32 = arith.constant 0 : index
    %28 = vector.load %arg4[%c2_30, %c0_31, %c0_32] : memref<3x128x128xf32, #tpu.memory_space<vmem>>, vector<1x128x128xf32>
    %29 = vector.shape_cast %28 : vector<1x128x128xf32> to vector<128x128xf32>
    %cst_33 = arith.constant dense<0.000000e+00> : vector<32x128xf32>
    %30 = tpu.matmul %27, %29, %cst_33 {dimension_numbers = #tpu.dot_dimension_numbers<[1], [0], [0], [1], [0, 0, 1, 1], [], []>} : vector<32x128xf32>, vector<128x128xf32>, vector<32x128xf32> -> vector<32x128xf32>
    %31 = arith.addf %25, %30 : vector<32x128xf32>
    %cst_34 = arith.constant 0.000000e+00 : f32
    %32 = vector.broadcast %cst_34 : f32 to vector<32x128xf32>
    %33 = arith.maximumf %31, %32 : vector<32x128xf32>
    %34 = vector.shape_cast %33 : vector<32x128xf32> to vector<2x16x128xf32>
    %c0_35 = arith.constant 0 : index
    %c0_36 = arith.constant 0 : index
    %c0_37 = arith.constant 0 : index
    %35 = vector.load %arg6[%c0_35, %c0_36, %c0_37] : memref<2x16x128xf32, #tpu.memory_space<vmem>>, vector<2x16x128xf32>
    tpu.vector_store %arg6[%c0_35, %c0_36, %c0_37], %34 {strides = array<i32>} : memref<2x16x128xf32, #tpu.memory_space<vmem>>, vector<2x16x128xf32>,
    return
  }
  func.func @transform_0(%arg0: i32) -> (i32, i32, i32) {
    %c0_i32 = arith.constant 0 : i32
    %c0_i32_0 = arith.constant 0 : i32
    %c0_i32_1 = arith.constant 0 : i32
    return %arg0, %c0_i32, %c0_i32_0 : i32, i32, i32
  }
  func.func @transform_1(%arg0: i32) -> (i32, i32) {
    %c0_i32 = arith.constant 0 : i32
    %c0_i32_0 = arith.constant 0 : i32
    %c0_i32_1 = arith.constant 0 : i32
    return %c0_i32, %c0_i32_0 : i32, i32
  }
  func.func @transform_2(%arg0: i32) -> (i32, i32) {
    %c0_i32 = arith.constant 0 : i32
    %c0_i32_0 = arith.constant 0 : i32
    %c0_i32_1 = arith.constant 0 : i32
    return %c0_i32, %c0_i32_0 : i32, i32
  }
  func.func @transform_3(%arg0: i32) -> (i32, i32, i32) {
    %c0_i32 = arith.constant 0 : i32
    %c0_i32_0 = arith.constant 0 : i32
    %c0_i32_1 = arith.constant 0 : i32
    %c0_i32_2 = arith.constant 0 : i32
    return %c0_i32, %c0_i32_0, %c0_i32_1 : i32, i32, i32
  }
  func.func @transform_4(%arg0: i32) -> (i32, i32) {
    %c0_i32 = arith.constant 0 : i32
    %c0_i32_0 = arith.constant 0 : i32
    %c0_i32_1 = arith.constant 0 : i32
    return %c0_i32, %c0_i32_0 : i32, i32
  }
  func.func @transform_5(%arg0: i32) -> (i32, i32, i32) {
    %c0_i32 = arith.constant 0 : i32
    %c0_i32_0 = arith.constant 0 : i32
    %c0_i32_1 = arith.constant 0 : i32
    return %arg0, %c0_i32, %c0_i32_0 : i32, i32, i32
  }
}

</mosaic_0001>

<llo_original>
// kernel: tpu_custom_call.1
$region0: #{tpu_custom_call.1}
  #allocation0 [shape = 'u32[]', space=smem, size = 0x4, offset = 0x4, fixed_abs, tag = 'smem constant byte address 0x4 - core index']
  #allocation1 [shape = 'u32[72,128]{1,0:T(1,128)}', space=vmem, size = 0x9000, scoped, tag = 'internal scratch']
  #allocation2 [shape = 'f32[2,18,128]{2,1,0:T(8,128)}', space=vmem, size = 0x6000, scoped, tag = 'scratch operand']
  %s0 = inlined_call_operand.hbm [shape: f32[2,16,64], index: 0, kind: input, shape index: {}]
  %s1 = inlined_call_operand.hbm [shape: f32[64,128], index: 1, kind: input, shape index: {}]
  %s2 = inlined_call_operand.vmem [shape: f32[1,128], index: 2, kind: input, shape index: {}]
  %s3 = inlined_call_operand.hbm [shape: f32[3,128,128], index: 3, kind: input, shape index: {}]
  %s4 = inlined_call_operand.vmem [shape: f32[1,128], index: 4, kind: input, shape index: {}]
  %s5 = inlined_call_operand.hbm [shape: f32[2,16,128], index: 5, kind: output, shape index: {}]
  %s6 = sld [smem:[#allocation0]]
  $region42: #{tpu_custom_call.1} parent=0
    _
  %s8 = ssub.s32 1, %s6
  %s9 = scalar_select 0, %s8, %s6
  $region1: #{tpu_custom_call.1} parent=0
    #allocation3 [shape = 'u8[16384]{0}', space=vmem, size = 0x4000, scoped, tag = 'input window, operand 0, single buffered']
    #allocation4 [shape = 's32[1]{0}', space=sflag, size = 0x4, scoped, tag = 'scoped memory for tpu_custom_call.1']
    #allocation5 [shape = 's32[1]{0}', space=sflag, size = 0x4, scoped, tag = 'scoped memory for tpu_custom_call.1']
    #allocation6 [shape = 'u8[32768]{0}', space=vmem, size = 0x8000, scoped, tag = 'input window, operand 1, single buffered']
    #allocation7 [shape = 's32[1]{0}', space=sflag, size = 0x4, scoped, tag = 'scoped memory for tpu_custom_call.1']
    #allocation8 [shape = 'u8[196608]{0}', space=vmem, size = 0x30000, scoped, tag = 'input window, operand 3, single buffered']
    #allocation9 [shape = 'u8[16384]{0}', space=vmem, size = 0x4000, scoped, tag = 'output window, operand 0, single buffered']
    %10 = vsyncpa [#allocation4], 0
    %11 = vsyncpa [#allocation7], 0
    %12 = vsyncpa [#allocation5], 0
    // Predicated region
    $region2: #{tpu_custom_call.1} parent=1 // pred_check
      _
    $region3: #{tpu_custom_call.1} parent=1 // pred_check_branch
      %14 = sbr.rel (0) target = $region5
    $region4: #{tpu_custom_call.1} parent=1 // pred_region
      %16 = vsyncadd [#allocation4], 0
      %s17 = sshll.u32 %s0, 4
      %s18 = int_to_ptr.hbm [resolvable:$true] %s17
      %s19 = sshll.u32 [#allocation3], 4
      %s20 = int_to_ptr.vmem [resolvable:$true] %s19
      %25 = dma.hbm_to_vmem [thread:$0]  %s18, 512, %s20, [#allocation4], 128, 128, 8
    $region5: #{tpu_custom_call.1} parent=1 // pred_fallthru
      _
    // Predicated region
    $region6: #{tpu_custom_call.1} parent=1 // pred_check
      _
    $region7: #{tpu_custom_call.1} parent=1 // pred_check_branch
      %27 = sbr.rel (0) target = $region9
    $region8: #{tpu_custom_call.1} parent=1 // pred_region
      %29 = vsyncadd [#allocation7], 0
      %s30 = sshll.u32 %s1, 4
      %s31 = int_to_ptr.hbm [resolvable:$true] %s30
      %s32 = sshll.u32 [#allocation6], 4
      %s33 = int_to_ptr.vmem [resolvable:$true] %s32
      %38 = dma.hbm_to_vmem [thread:$0]  %s31, 1024, %s33, [#allocation7], 128, 128, 8
    $region9: #{tpu_custom_call.1} parent=1 // pred_fallthru
      _
    // Predicated region
    $region10: #{tpu_custom_call.1} parent=1 // pred_check
      _
    $region11: #{tpu_custom_call.1} parent=1 // pred_check_branch
      %40 = sbr.rel (0) target = $region13
    $region12: #{tpu_custom_call.1} parent=1 // pred_region
      _
    $region13: #{tpu_custom_call.1} parent=1 // pred_fallthru
      _
    // Predicated region
    $region14: #{tpu_custom_call.1} parent=1 // pred_check
      _
    $region15: #{tpu_custom_call.1} parent=1 // pred_check_branch
      %42 = sbr.rel (0) target = $region17
    $region16: #{tpu_custom_call.1} parent=1 // pred_region
      %44 = vsyncadd [#allocation7], 0
      %s45 = sshll.u32 %s3, 4
      %s46 = int_to_ptr.hbm [resolvable:$true] %s45
      %s47 = sshll.u32 [#allocation8], 4
      %s48 = int_to_ptr.vmem [resolvable:$true] %s47
      %53 = dma.hbm_to_vmem [thread:$0]  %s46, 6144, %s48, [#allocation7], 128, 128, 8
    $region17: #{tpu_custom_call.1} parent=1 // pred_fallthru
      _
    // Predicated region
    $region18: #{tpu_custom_call.1} parent=1 // pred_check
      _
    $region19: #{tpu_custom_call.1} parent=1 // pred_check_branch
      %55 = sbr.rel (0) target = $region21
    $region20: #{tpu_custom_call.1} parent=1 // pred_region
      _
    $region21: #{tpu_custom_call.1} parent=1 // pred_fallthru
      _
    // Predicated region
    $region22: #{tpu_custom_call.1} parent=1 // pred_check
      _
    $region23: #{tpu_custom_call.1} parent=1 // pred_check_branch
      %57 = sbr.rel (0) target = $region25
    $region24: #{tpu_custom_call.1} parent=1 // pred_region
      %59 = dma.done [#allocation4], 512
    $region25: #{tpu_custom_call.1} parent=1 // pred_fallthru
      _
    // Predicated region
    $region26: #{tpu_custom_call.1} parent=1 // pred_check
      _
    $region27: #{tpu_custom_call.1} parent=1 // pred_check_branch
      %61 = sbr.rel (0) target = $region29
    $region28: #{tpu_custom_call.1} parent=1 // pred_region
      %63 = dma.done [#allocation7], 1024
    $region29: #{tpu_custom_call.1} parent=1 // pred_fallthru
      _
    // Predicated region
    $region30: #{tpu_custom_call.1} parent=1 // pred_check
      _
    $region31: #{tpu_custom_call.1} parent=1 // pred_check_branch
      %65 = sbr.rel (0) target = $region33
    $region32: #{tpu_custom_call.1} parent=1 // pred_region
      %67 = dma.done [#allocation7], 6144
    $region33: #{tpu_custom_call.1} parent=1 // pred_fallthru
      _
    %v68 = vld [vmem:[#allocation3] sm:$0xff]
    %v69 = vld [vmem:[#allocation3 + $0x8] sm:$0xff]
    %v70 = vld [vmem:[#allocation3 + $0x10] sm:$0xff]
    %v71 = vld [vmem:[#allocation3 + $0x18] sm:$0xff]
    %v72 = vld [vmem:[#allocation6] sm:$0xff]
    %v73 = vld [vmem:[#allocation6 + $0x8] sm:$0xff]
    %v74 = vld [vmem:[#allocation6 + $0x10] sm:$0xff]
    %v75 = vld [vmem:[#allocation6 + $0x18] sm:$0xff]
    %v76 = vld [vmem:[#allocation6 + $0x20] sm:$0xff]
    %v77 = vld [vmem:[#allocation6 + $0x28] sm:$0xff]
    %v78 = vld [vmem:[#allocation6 + $0x30] sm:$0xff]
    %v79 = vld [vmem:[#allocation6 + $0x38] sm:$0xff]
    %v80 = vld [vmem:[%s2] sm:$0x1]
    %v82 = vperm.slane %v80, 0
    %vm84 = vcmask 523264
    %v86 = vsel %vm84, %v68, 0
    %v89 = vsel %vm84, %v69, 0
    %v92 = vsel %vm84, %v70, 0
    %v95 = vsel %vm84, %v71, 0
    %97 = vmatpush.msra.mxu0 0.0
    %98 = vmatpush.msra.mxu0 0.0
    %99 = vmatpush.msra.mxu0 0.0
    %100 = vmatpush.msra.mxu0 0.0
    %101 = vmatpush.msra.mxu0 0.0
    %102 = vmatpush.msra.mxu0 0.0
    %103 = vmatpush.msra.mxu0 0.0
    %104 = vmatpush.msra.mxu0 0.0
    %105 = vmatpush.msra.mxu0 %v79
    %106 = vmatpush.msra.mxu0 %v78
    %107 = vmatpush.msra.mxu0 %v77
    %108 = vmatpush.msra.mxu0 %v76
    %109 = vmatpush.msra.mxu0 %v75
    %110 = vmatpush.msra.mxu0 %v74
    %111 = vmatpush.msra.mxu0 %v73
    %112 = vmatpush.msra.mxu0 %v72
    %113 = vmatmul.f32.gmra.mxu0 %v86
    %v114 = vpop.f32.mrf.mxu0
    %v115 = vadd.f32 %v82, %v114
    %116 = vmatmul.f32.gmra.mxu0 %v89
    %v117 = vpop.f32.mrf.mxu0
    %v118 = vadd.f32 %v82, %v117
    %119 = vmatmul.f32.gmra.mxu0 %v92
    %v120 = vpop.f32.mrf.mxu0
    %v121 = vadd.f32 %v82, %v120
    %122 = vmatmul.f32.gmra.mxu0 %v95
    %v123 = vpop.f32.mrf.mxu0
    %v124 = vadd.f32 %v82, %v123
    %125 = vdwg.mxu0
    %v126 = vmax.f32 %v115, 0.0
    %v127 = vmax.f32 %v118, 0.0
    %v128 = vmax.f32 %v121, 0.0
    %v129 = vmax.f32 %v124, 0.0
    %130 = vst [vmem:[#allocation2 + $0x1] sm:$0xff] %v126
    %131 = vst [vmem:[#allocation2 + $0x9] sm:$0xff] %v127
    %132 = vst [vmem:[#allocation2 + $0x19] sm:$0xff] %v128
    %133 = vst [vmem:[#allocation2 + $0x21] sm:$0xff] %v129
    %134 = vst [vmem:[#allocation2] sm:$0x1] 0.0
    %135 = vst [vmem:[#allocation2 + $0x18] sm:$0x1] 0.0
    %136 = vst [vmem:[#allocation2 + $0x11] sm:$0x1] 0.0
    %137 = vst [vmem:[#allocation2 + $0x29] sm:$0x1] 0.0
    %s138 = scalar_lea.vmem [#allocation8], 128
    %v139 = vld [vmem:[%s138] sm:$0xff]
    %v140 = vld [vmem:[%s138 + $0x8] sm:$0xff]
    %v141 = vld [vmem:[%s138 + $0x10] sm:$0xff]
    %v142 = vld [vmem:[%s138 + $0x18] sm:$0xff]
    %v143 = vld [vmem:[%s138 + $0x20] sm:$0xff]
    %v144 = vld [vmem:[%s138 + $0x28] sm:$0xff]
    %v145 = vld [vmem:[%s138 + $0x30] sm:$0xff]
    %v146 = vld [vmem:[%s138 + $0x38] sm:$0xff]
    %v147 = vld [vmem:[%s138 + $0x40] sm:$0xff]
    %v148 = vld [vmem:[%s138 + $0x48] sm:$0xff]
    %v149 = vld [vmem:[%s138 + $0x50] sm:$0xff]
    %v150 = vld [vmem:[%s138 + $0x58] sm:$0xff]
    %v151 = vld [vmem:[%s138 + $0x60] sm:$0xff]
    %v152 = vld [vmem:[%s138 + $0x68] sm:$0xff]
    %v153 = vld [vmem:[%s138 + $0x70] sm:$0xff]
    %v154 = vld [vmem:[%s138 + $0x78] sm:$0xff]
    %v155 = vld [vmem:[%s4] sm:$0x1]
    %v157 = vperm.slane %v155, 0
    %159 = vmatpush.msra.mxu0 %v154
    %160 = vmatpush.msra.mxu0 %v153
    %161 = vmatpush.msra.mxu0 %v152
    %162 = vmatpush.msra.mxu0 %v151
    %163 = vmatpush.msra.mxu0 %v150
    %164 = vmatpush.msra.mxu0 %v149
    %165 = vmatpush.msra.mxu0 %v148
    %166 = vmatpush.msra.mxu0 %v147
    %167 = vmatpush.msra.mxu0 %v146
    %168 = vmatpush.msra.mxu0 %v145
    %169 = vmatpush.msra.mxu0 %v144
    %170 = vmatpush.msra.mxu0 %v143
    %171 = vmatpush.msra.mxu0 %v142
    %172 = vmatpush.msra.mxu0 %v141
    %173 = vmatpush.msra.mxu0 %v140
    %174 = vmatpush.msra.mxu0 %v139
    %175 = vmatmul.f32.gmra.mxu0 %v126
    %v176 = vpop.f32.mrf.mxu0
    %v177 = vadd.f32 %v157, %v176
    %178 = vmatmul.f32.gmra.mxu0 %v127
    %v179 = vpop.f32.mrf.mxu0
    %v180 = vadd.f32 %v157, %v179
    %181 = vmatmul.f32.gmra.mxu0 %v128
    %v182 = vpop.f32.mrf.mxu0
    %v183 = vadd.f32 %v157, %v182
    %184 = vmatmul.f32.gmra.mxu0 %v129
    %v185 = vpop.f32.mrf.mxu0
    %v186 = vadd.f32 %v157, %v185
    %187 = vdwg.mxu0
    %v188 = vld [vmem:[#allocation2] sm:$0xff]
    %v189 = vld [vmem:[#allocation2 + $0x8] sm:$0xff]
    %v190 = vld [vmem:[#allocation2 + $0x18] sm:$0xff]
    %v191 = vld [vmem:[#allocation2 + $0x20] sm:$0xff]
    %v192 = vld [vmem:[#allocation8] sm:$0xff]
    %v193 = vld [vmem:[#allocation8 + $0x8] sm:$0xff]
    %v194 = vld [vmem:[#allocation8 + $0x10] sm:$0xff]
    %v195 = vld [vmem:[#allocation8 + $0x18] sm:$0xff]
    %v196 = vld [vmem:[#allocation8 + $0x20] sm:$0xff]
    %v197 = vld [vmem:[#allocation8 + $0x28] sm:$0xff]
    %v198 = vld [vmem:[#allocation8 + $0x30] sm:$0xff]
    %v199 = vld [vmem:[#allocation8 + $0x38] sm:$0xff]
    %v200 = vld [vmem:[#allocation8 + $0x40] sm:$0xff]
    %v201 = vld [vmem:[#allocation8 + $0x48] sm:$0xff]
    %v202 = vld [vmem:[#allocation8 + $0x50] sm:$0xff]
    %v203 = vld [vmem:[#allocation8 + $0x58] sm:$0xff]
    %v204 = vld [vmem:[#allocation8 + $0x60] sm:$0xff]
    %v205 = vld [vmem:[#allocation8 + $0x68] sm:$0xff]
    %v206 = vld [vmem:[#allocation8 + $0x70] sm:$0xff]
    %v207 = vld [vmem:[#allocation8 + $0x78] sm:$0xff]
    %208 = vmatpush.msra.mxu0 %v207
    %209 = vmatpush.msra.mxu0 %v206
    %210 = vmatpush.msra.mxu0 %v205
    %211 = vmatpush.msra.mxu0 %v204
    %212 = vmatpush.msra.mxu0 %v203
    %213 = vmatpush.msra.mxu0 %v202
    %214 = vmatpush.msra.mxu0 %v201
    %215 = vmatpush.msra.mxu0 %v200
    %216 = vmatpush.msra.mxu0 %v199
    %217 = vmatpush.msra.mxu0 %v198
    %218 = vmatpush.msra.mxu0 %v197
    %219 = vmatpush.msra.mxu0 %v196
    %220 = vmatpush.msra.mxu0 %v195
    %221 = vmatpush.msra.mxu0 %v194
    %222 = vmatpush.msra.mxu0 %v193
    %223 = vmatpush.msra.mxu0 %v192
    %224 = vmatmul.f32.gmra.mxu0 %v188
    %v225 = vpop.f32.mrf.mxu0
    %v226 = vadd.f32 0.0, %v225
    %227 = vmatmul.f32.gmra.mxu0 %v189
    %v228 = vpop.f32.mrf.mxu0
    %v229 = vadd.f32 0.0, %v228
    %230 = vmatmul.f32.gmra.mxu0 %v190
    %v231 = vpop.f32.mrf.mxu0
    %v232 = vadd.f32 0.0, %v231
    %233 = vmatmul.f32.gmra.mxu0 %v191
    %v234 = vpop.f32.mrf.mxu0
    %v235 = vadd.f32 0.0, %v234
    %236 = vdwg.mxu0
    %v237 = vadd.f32 %v177, %v226
    %v238 = vadd.f32 %v180, %v229
    %v239 = vadd.f32 %v183, %v232
    %v240 = vadd.f32 %v186, %v235
    %v241 = vld [vmem:[#allocation2 + $0x2] sm:$0xff]
    %v242 = vld [vmem:[#allocation2 + $0xa] sm:$0xff]
    %v243 = vld [vmem:[#allocation2 + $0x1a] sm:$0xff]
    %v244 = vld [vmem:[#allocation2 + $0x22] sm:$0xff]
    %s245 = scalar_lea.vmem [#allocation8], 256
    %v246 = vld [vmem:[%s245] sm:$0xff]
    %v247 = vld [vmem:[%s245 + $0x8] sm:$0xff]
    %v248 = vld [vmem:[%s245 + $0x10] sm:$0xff]
    %v249 = vld [vmem:[%s245 + $0x18] sm:$0xff]
    %v250 = vld [vmem:[%s245 + $0x20] sm:$0xff]
    %v251 = vld [vmem:[%s245 + $0x28] sm:$0xff]
    %v252 = vld [vmem:[%s245 + $0x30] sm:$0xff]
    %v253 = vld [vmem:[%s245 + $0x38] sm:$0xff]
    %v254 = vld [vmem:[%s245 + $0x40] sm:$0xff]
    %v255 = vld [vmem:[%s245 + $0x48] sm:$0xff]
    %v256 = vld [vmem:[%s245 + $0x50] sm:$0xff]
    %v257 = vld [vmem:[%s245 + $0x58] sm:$0xff]
    %v258 = vld [vmem:[%s245 + $0x60] sm:$0xff]
    %v259 = vld [vmem:[%s245 + $0x68] sm:$0xff]
    %v260 = vld [vmem:[%s245 + $0x70] sm:$0xff]
    %v261 = vld [vmem:[%s245 + $0x78] sm:$0xff]
    %262 = vmatpush.msra.mxu0 %v261
    %263 = vmatpush.msra.mxu0 %v260
    %264 = vmatpush.msra.mxu0 %v259
    %265 = vmatpush.msra.mxu0 %v258
    %266 = vmatpush.msra.mxu0 %v257
    %267 = vmatpush.msra.mxu0 %v256
    %268 = vmatpush.msra.mxu0 %v255
    %269 = vmatpush.msra.mxu0 %v254
    %270 = vmatpush.msra.mxu0 %v253
    %271 = vmatpush.msra.mxu0 %v252
    %272 = vmatpush.msra.mxu0 %v251
    %273 = vmatpush.msra.mxu0 %v250
    %274 = vmatpush.msra.mxu0 %v249
    %275 = vmatpush.msra.mxu0 %v248
    %276 = vmatpush.msra.mxu0 %v247
    %277 = vmatpush.msra.mxu0 %v246
    %278 = vmatmul.f32.gmra.mxu0 %v241
    %v279 = vpop.f32.mrf.mxu0
    %v280 = vadd.f32 0.0, %v279
    %281 = vmatmul.f32.gmra.mxu0 %v242
    %v282 = vpop.f32.mrf.mxu0
    %v283 = vadd.f32 0.0, %v282
    %284 = vmatmul.f32.gmra.mxu0 %v243
    %v285 = vpop.f32.mrf.mxu0
    %v286 = vadd.f32 0.0, %v285
    %287 = vmatmul.f32.gmra.mxu0 %v244
    %v288 = vpop.f32.mrf.mxu0
    %v289 = vadd.f32 0.0, %v288
    %290 = vdwg.mxu0
    %v291 = vadd.f32 %v237, %v280
    %v292 = vadd.f32 %v238, %v283
    %v293 = vadd.f32 %v239, %v286
    %v294 = vadd.f32 %v240, %v289
    %v295 = vmax.f32 %v291, 0.0
    %v296 = vmax.f32 %v292, 0.0
    %v297 = vmax.f32 %v293, 0.0
    %v298 = vmax.f32 %v294, 0.0
    %299 = vst [vmem:[#allocation9] sm:$0xff] %v295
    %300 = vst [vmem:[#allocation9 + $0x8] sm:$0xff] %v296
    %301 = vst [vmem:[#allocation9 + $0x10] sm:$0xff] %v297
    %302 = vst [vmem:[#allocation9 + $0x18] sm:$0xff] %v298
    // Predicated region
    $region34: #{tpu_custom_call.1} parent=1 // pred_check
      _
    $region35: #{tpu_custom_call.1} parent=1 // pred_check_branch
      %304 = sbr.rel (0) target = $region37
    $region36: #{tpu_custom_call.1} parent=1 // pred_region
      %306 = vsyncadd [#allocation5], 0
      %s307 = sshll.u32 [#allocation9], 4
      %s308 = int_to_ptr.vmem [resolvable:$true] %s307
      %s309 = sshll.u32 %s5, 4
      %s310 = int_to_ptr.hbm [resolvable:$true] %s309
      %315 = dma.vmem_to_hbm [thread:$0]  %s308, 512, %s310, [#allocation5], 128, 128, 8
    $region37: #{tpu_custom_call.1} parent=1 // pred_fallthru
      _
    // Predicated region
    $region38: #{tpu_custom_call.1} parent=1 // pred_check
      _
    $region39: #{tpu_custom_call.1} parent=1 // pred_check_branch
      %317 = sbr.rel (0) target = $region41
    $region40: #{tpu_custom_call.1} parent=1 // pred_region
      %319 = dma.done [#allocation5], 512
    $region41: #{tpu_custom_call.1} parent=1 // pred_fallthru
      _
    %320 = vsyncpa [#allocation4], 1
    %321 = vsyncpa [#allocation7], 1
    %322 = vsyncpa [#allocation5], 1

</llo_original>
